<compile_context>
chip_gen: v6e
topology: v6e:2x2x1
jax: 0.10.0
libtpu: 0.0.40
codegen_flags: <defaults>
</compile_context>

<pallas_src>
import jax
import jax.numpy as jnp
from jax.experimental import pallas as pl
from jax.experimental.pallas import tpu as pltpu


def _cdiv(a, b):
    return -(-a // b)


def se_scale_kernel(x_ref, w1_ref, b1_ref, w2_ref, b2_ref, o_ref):
    # fc1 + ReLU on this row tile (lane-dense width = fold*C).
    h = jnp.dot(x_ref[...], w1_ref[...], preferred_element_type=jnp.float32)
    h = jnp.maximum(h + b1_ref[...], 0.0)
    # fc2 + sigmoid.
    y = jnp.dot(h, w2_ref[...], preferred_element_type=jnp.float32)
    o_ref[...] = jax.nn.sigmoid(y + b2_ref[...]).astype(o_ref.dtype)


def prepare_se_scale_params(w1, b1, w2, b2, dtype=jnp.float32):
    """One-time parameter prep (do NOT call per forward pass).

    w1: (R, C), b1: (R,), w2: (C, R), b2: (C,) -- PyTorch nn.Linear layout.
    Returns (w1s, b1s, w2s, b2s): transposed and, if C evenly divides 128,
    block-diagonally expanded by fold = 128 // C so the kernel operates on a
    lane-dense (N/fold, fold*C) view of x (same math, unmasked 128-lane IO).
    `dtype` may be set to bf16 for bandwidth-bound speedup if the accuracy
    tolerance allows (f32 accumulation is kept either way).
    """
    r, c = w1.shape
    fold = 128 // c if (c < 128 and 128 % c == 0) else 1
    w1t = jnp.asarray(w1, dtype).T      # (C, R)
    w2t = jnp.asarray(w2, dtype).T      # (R, C)
    b1 = jnp.asarray(b1, jnp.float32)
    b2 = jnp.asarray(b2, jnp.float32)
    if fold > 1:
        eye = jnp.eye(fold, dtype=dtype)
        w1s = jnp.kron(eye, w1t)              # (fold*C, fold*R) block-diagonal
        w2s = jnp.kron(eye, w2t)              # (fold*R, fold*C) block-diagonal
        b1s = jnp.tile(b1, fold).reshape(1, fold * r)
        b2s = jnp.tile(b2, fold).reshape(1, fold * c)
    else:
        w1s, w2s = w1t, w2t
        b1s = b1.reshape(1, r)
        b2s = b2.reshape(1, c)
    return w1s, b1s, w2s, b2s


def _pick_tile(nf, max_tile, min_split_tile=256):
    """Fixed power-of-two row tile.

    * nf <= min_split_tile: single full-extent block (always a legal
      block_shape; no masking, no oversized VMEM allocation).
    * Otherwise: the largest power-of-two tile <= max_tile that still yields
      >= 2 grid steps, so both v7x TensorCores get work; the last block may be
      partial and is masked by Pallas.
    """
    if nf <= min_split_tile:
        return nf
    tile = max_tile
    while tile > min_split_tile and nf <= tile:
        tile //= 2
    return tile


def se_scale(x, params, *, tile_rows=2048):
    """Fused SEScale gate: sigmoid(relu(x @ w1.T + b1) @ w2.T + b2).

    x: (..., C) -- any number of leading dims (flattened like nn.Linear).
    params: output of prepare_se_scale_params.
    """
    w1s, b1s, w2s, b2s = params
    cf, rf = w1s.shape
    orig_shape = x.shape
    c = orig_shape[-1]
    if cf % c != 0:
        raise ValueError("params were prepared for a different channel count")
    fold = cf // c

    x2 = x.reshape(-1, c)
    n = x2.shape[0]

    # Lane folding: (n, C) -> (n/fold, fold*C).  Only pad when n is not a
    # multiple of fold (rare) -- the common path has no extra HBM copy.
    nf = _cdiv(n, fold)
    n_fold = nf * fold
    if n_fold != n:
        x2 = jnp.pad(x2, ((0, n_fold - n), (0, 0)))
    xf = x2.reshape(nf, cf)                    # lane-dense view (width fold*C)

    tile = _pick_tile(nf, tile_rows)
    num_steps = _cdiv(nf, tile)                # last block may be partial (masked)

    flops = 2 * nf * cf * rf * 2               # two matmuls per row
    bytes_accessed = 4 * (2 * nf * cf + w1s.size + w2s.size + b1s.size + b2s.size)

    out_f = pl.pallas_call(
        se_scale_kernel,
        out_shape=jax.ShapeDtypeStruct((nf, cf), x.dtype),
        grid=(num_steps,),
        in_specs=[
            pl.BlockSpec((tile, cf), lambda i: (i, 0)),   # x tile (streamed)
            pl.BlockSpec((cf, rf), lambda i: (0, 0)),     # w1 (VMEM-resident)
            pl.BlockSpec((1, rf), lambda i: (0, 0)),      # b1 (VMEM-resident)
            pl.BlockSpec((rf, cf), lambda i: (0, 0)),     # w2 (VMEM-resident)
            pl.BlockSpec((1, cf), lambda i: (0, 0)),      # b2 (VMEM-resident)
        ],
        out_specs=pl.BlockSpec((tile, cf), lambda i: (i, 0)),
        compiler_params=pltpu.CompilerParams(
            dimension_semantics=("parallel",)),
        cost_estimate=pl.CostEstimate(
            flops=flops, transcendentals=nf * cf, bytes_accessed=bytes_accessed),
    )(xf, w1s, b1s, w2s, b2s)

    out = out_f.reshape(n_fold, c)
    if n_fold != n:                            # only on the fold-padded path
        out = out[:n]
    return out.reshape(orig_shape)


def se_scale_ref(x, w1, b1, w2, b2):
    h = jnp.maximum(x @ w1.T + b1, 0.0)
    return jax.nn.sigmoid(h @ w2.T + b2)


if __name__ == "__main__":
    key = jax.random.PRNGKey(0)
    k_x, k_w1, k_b1, k_w2, k_b2 = jax.random.split(key, 5)

    # SEScale(in_channels=64, reduction=16)
    in_channels, reduction = 64, 16

    bound1 = 1.0 / (in_channels ** 0.5)
    w1 = jax.random.uniform(k_w1, (reduction, in_channels), jnp.float32, -bound1, bound1)
    b1 = jax.random.uniform(k_b1, (reduction,), jnp.float32, -bound1, bound1)
    bound2 = 1.0 / (reduction ** 0.5)
    w2 = jax.random.uniform(k_w2, (in_channels, reduction), jnp.float32, -bound2, bound2)
    b2 = jax.random.uniform(k_b2, (in_channels,), jnp.float32, -bound2, bound2)

    # One-time prep (transpose + lane-folding) outside the per-call path.
    params = prepare_se_scale_params(w1, b1, w2, b2)
    fwd = jax.jit(se_scale)

    # batch=8: tiny, single full-extent block, no padding.
    # batch=13: odd -> exercises the fold-padding path.
    # batch=1040: 2 grid steps with a masked partial last block (520 rows, tile 512).
    # batch=4128: 2 grid steps at the max 2048-row tile, masked partial last block.
    for batch in (8, 13, 1040, 4128):
        x = jax.random.normal(k_x, (batch, in_channels), dtype=jnp.float32)
        out = jax.block_until_ready(fwd(x, params))
        ref = se_scale_ref(x, w1, b1, w2, b2)
        assert out.shape == (batch, in_channels)
        assert jnp.allclose(out, ref, atol=1e-5, rtol=1e-5), f"mismatch at batch={batch}"

    print("KERNEL_OK")
</pallas_src>

<mosaic_0001>
module attributes {stable_mosaic.version = 11 : i64} {
  func.func @se_scale_kernel(%arg0: i32, %arg1: memref<4x128xf32, #tpu.memory_space<vmem>>, %arg2: memref<128x32xf32, #tpu.memory_space<vmem>>, %arg3: memref<1x32xf32, #tpu.memory_space<vmem>>, %arg4: memref<32x128xf32, #tpu.memory_space<vmem>>, %arg5: memref<1x128xf32, #tpu.memory_space<vmem>>, %arg6: memref<4x128xf32, #tpu.memory_space<vmem>>) attributes {dimension_semantics = [#tpu.dimension_semantics<parallel>], iteration_bounds = array<i64: 1>, scalar_prefetch = 0 : i64, scratch_operands = 0 : i64, tpu.core_type = #tpu.core_type<tc>, window_params = [{transform_indices = @transform_0, window_bounds = array<i64: 4, 128>}, {pipeline_mode = #tpu.pipeline_mode<synchronous>, transform_indices = @transform_1, window_bounds = array<i64: 128, 32>}, {pipeline_mode = #tpu.pipeline_mode<synchronous>, transform_indices = @transform_2, window_bounds = array<i64: 1, 32>}, {pipeline_mode = #tpu.pipeline_mode<synchronous>, transform_indices = @transform_3, window_bounds = array<i64: 32, 128>}, {pipeline_mode = #tpu.pipeline_mode<synchronous>, transform_indices = @transform_4, window_bounds = array<i64: 1, 128>}, {transform_indices = @transform_5, window_bounds = array<i64: 4, 128>}]} {
    %c0 = arith.constant 0 : index
    %c0_0 = arith.constant 0 : index
    %0 = vector.load %arg1[%c0, %c0_0] : memref<4x128xf32, #tpu.memory_space<vmem>>, vector<4x128xf32>
    %c0_1 = arith.constant 0 : index
    %c0_2 = arith.constant 0 : index
    %1 = vector.load %arg2[%c0_1, %c0_2] : memref<128x32xf32, #tpu.memory_space<vmem>>, vector<128x32xf32>
    %cst = arith.constant dense<0.000000e+00> : vector<4x32xf32>
    %2 = tpu.matmul %0, %1, %cst {dimension_numbers = #tpu.dot_dimension_numbers<[1], [0], [0], [1], [0, 0, 1, 1], [], []>} : vector<4x128xf32>, vector<128x32xf32>, vector<4x32xf32> -> vector<4x32xf32>
    %c0_3 = arith.constant 0 : index
    %c0_4 = arith.constant 0 : index
    %3 = vector.load %arg3[%c0_3, %c0_4] : memref<1x32xf32, #tpu.memory_space<vmem>>, vector<1x32xf32>
    %4 = vector.broadcast %3 : vector<1x32xf32> to vector<4x32xf32>
    %5 = arith.addf %2, %4 : vector<4x32xf32>
    %cst_5 = arith.constant 0.000000e+00 : f32
    %6 = vector.broadcast %cst_5 : f32 to vector<4x32xf32>
    %7 = arith.maximumf %5, %6 : vector<4x32xf32>
    %c0_6 = arith.constant 0 : index
    %c0_7 = arith.constant 0 : index
    %8 = vector.load %arg4[%c0_6, %c0_7] : memref<32x128xf32, #tpu.memory_space<vmem>>, vector<32x128xf32>
    %cst_8 = arith.constant dense<0.000000e+00> : vector<4x128xf32>
    %9 = tpu.matmul %7, %8, %cst_8 {dimension_numbers = #tpu.dot_dimension_numbers<[1], [0], [0], [1], [0, 0, 1, 1], [], []>} : vector<4x32xf32>, vector<32x128xf32>, vector<4x128xf32> -> vector<4x128xf32>
    %c0_9 = arith.constant 0 : index
    %c0_10 = arith.constant 0 : index
    %10 = vector.load %arg5[%c0_9, %c0_10] : memref<1x128xf32, #tpu.memory_space<vmem>>, vector<1x128xf32>
    %11 = vector.broadcast %10 : vector<1x128xf32> to vector<4x128xf32>
    %12 = arith.addf %9, %11 : vector<4x128xf32>
    %13 = arith.negf %12 : vector<4x128xf32>
    %14 = math.exp %13 : vector<4x128xf32>
    %cst_11 = arith.constant 1.000000e+00 : f32
    %15 = vector.broadcast %cst_11 : f32 to vector<4x128xf32>
    %16 = arith.addf %15, %14 : vector<4x128xf32>
    %17 = arith.divf %15, %16 : vector<4x128xf32>
    %c0_12 = arith.constant 0 : index
    %c0_13 = arith.constant 0 : index
    %18 = vector.load %arg6[%c0_12, %c0_13] : memref<4x128xf32, #tpu.memory_space<vmem>>, vector<4x128xf32>
    tpu.vector_store %arg6[%c0_12, %c0_13], %17 {strides = array<i32>} : memref<4x128xf32, #tpu.memory_space<vmem>>, vector<4x128xf32>,
    return
  }
  func.func @transform_0(%arg0: i32) -> (i32, i32) {
    %c0_i32 = arith.constant 0 : i32
    %c0_i32_0 = arith.constant 0 : i32
    return %arg0, %c0_i32 : i32, i32
  }
  func.func @transform_1(%arg0: i32) -> (i32, i32) {
    %c0_i32 = arith.constant 0 : i32
    %c0_i32_0 = arith.constant 0 : i32
    %c0_i32_1 = arith.constant 0 : i32
    return %c0_i32, %c0_i32_0 : i32, i32
  }
  func.func @transform_2(%arg0: i32) -> (i32, i32) {
    %c0_i32 = arith.constant 0 : i32
    %c0_i32_0 = arith.constant 0 : i32
    %c0_i32_1 = arith.constant 0 : i32
    return %c0_i32, %c0_i32_0 : i32, i32
  }
  func.func @transform_3(%arg0: i32) -> (i32, i32) {
    %c0_i32 = arith.constant 0 : i32
    %c0_i32_0 = arith.constant 0 : i32
    %c0_i32_1 = arith.constant 0 : i32
    return %c0_i32, %c0_i32_0 : i32, i32
  }
  func.func @transform_4(%arg0: i32) -> (i32, i32) {
    %c0_i32 = arith.constant 0 : i32
    %c0_i32_0 = arith.constant 0 : i32
    %c0_i32_1 = arith.constant 0 : i32
    return %c0_i32, %c0_i32_0 : i32, i32
  }
  func.func @transform_5(%arg0: i32) -> (i32, i32) {
    %c0_i32 = arith.constant 0 : i32
    %c0_i32_0 = arith.constant 0 : i32
    return %arg0, %c0_i32 : i32, i32
  }
}

</mosaic_0001>

<llo_original>
// kernel: se_scale.1
$region0: #{se_scale.1}
  #allocation0 [shape = 'u32[]', space=smem, size = 0x4, offset = 0x4, fixed_abs, tag = 'smem constant byte address 0x4 - core index']
  #allocation1 [shape = 'u32[144,128]{1,0:T(1,128)}', space=vmem, size = 0x12000, scoped, tag = 'internal scratch']
  %s0 = inlined_call_operand.vmem [shape: f32[4,128], index: 0, kind: input, shape index: {}]
  %s1 = inlined_call_operand.vmem [shape: f32[128,32], index: 1, kind: input, shape index: {}]
  %s2 = inlined_call_operand.vmem [shape: f32[1,32], index: 2, kind: input, shape index: {}]
  %s3 = inlined_call_operand.vmem [shape: f32[32,128], index: 3, kind: input, shape index: {}]
  %s4 = inlined_call_operand.vmem [shape: f32[1,128], index: 4, kind: input, shape index: {}]
  %s5 = inlined_call_operand.vmem [shape: f32[4,128], index: 5, kind: output, shape index: {}]
  %s6 = sld [smem:[#allocation0]]
  $region30: #{se_scale.1} parent=0
    _
  %s8 = ssub.s32 1, %s6
  %s9 = scalar_select 0, %s8, %s6
  // Predicated region
  $region2: #{se_scale.1} parent=0 // pred_check
    _
  $region3: #{se_scale.1} parent=0 // pred_check_branch
    %11 = sbr.rel (0) target = $region5
  $region4: #{se_scale.1} parent=0 // pred_region
    _
  $region5: #{se_scale.1} parent=0 // pred_fallthru
    _
  // Predicated region
  $region6: #{se_scale.1} parent=0 // pred_check
    _
  $region7: #{se_scale.1} parent=0 // pred_check_branch
    %13 = sbr.rel (0) target = $region9
  $region8: #{se_scale.1} parent=0 // pred_region
    _
  $region9: #{se_scale.1} parent=0 // pred_fallthru
    _
  // Predicated region
  $region10: #{se_scale.1} parent=0 // pred_check
    _
  $region11: #{se_scale.1} parent=0 // pred_check_branch
    %15 = sbr.rel (0) target = $region13
  $region12: #{se_scale.1} parent=0 // pred_region
    _
  $region13: #{se_scale.1} parent=0 // pred_fallthru
    _
  // Predicated region
  $region14: #{se_scale.1} parent=0 // pred_check
    _
  $region15: #{se_scale.1} parent=0 // pred_check_branch
    %17 = sbr.rel (0) target = $region17
  $region16: #{se_scale.1} parent=0 // pred_region
    _
  $region17: #{se_scale.1} parent=0 // pred_fallthru
    _
  // Predicated region
  $region18: #{se_scale.1} parent=0 // pred_check
    _
  $region19: #{se_scale.1} parent=0 // pred_check_branch
    %19 = sbr.rel (0) target = $region21
  $region20: #{se_scale.1} parent=0 // pred_region
    _
  $region21: #{se_scale.1} parent=0 // pred_fallthru
    _
  %v20 = vld [vmem:[%s0] sm:$0xf]
  %v21 = vld [vmem:[%s1] sm:$0xff]
  %v22 = vld [vmem:[%s1 + $0x8] sm:$0xff]
  %v23 = vld [vmem:[%s1 + $0x10] sm:$0xff]
  %v24 = vld [vmem:[%s1 + $0x18] sm:$0xff]
  %v25 = vld [vmem:[%s1 + $0x20] sm:$0xff]
  %v26 = vld [vmem:[%s1 + $0x28] sm:$0xff]
  %v27 = vld [vmem:[%s1 + $0x30] sm:$0xff]
  %v28 = vld [vmem:[%s1 + $0x38] sm:$0xff]
  %v29 = vld [vmem:[%s1 + $0x40] sm:$0xff]
  %v30 = vld [vmem:[%s1 + $0x48] sm:$0xff]
  %v31 = vld [vmem:[%s1 + $0x50] sm:$0xff]
  %v32 = vld [vmem:[%s1 + $0x58] sm:$0xff]
  %v33 = vld [vmem:[%s1 + $0x60] sm:$0xff]
  %v34 = vld [vmem:[%s1 + $0x68] sm:$0xff]
  %v35 = vld [vmem:[%s1 + $0x70] sm:$0xff]
  %v36 = vld [vmem:[%s1 + $0x78] sm:$0xff]
  %v37 = vld [vmem:[%s2] sm:$0x1]
  %v39 = vlaneseq
  %v40 = vshrl.u32 %v39, 7
  %v41 = vsub.s32 0, %v40
  %v42 = vrot.slane %v37, %v41
  %44 = vmatprep.subr.mxu0 0.0
  %45 = vmatpush1.msra.mxu0 %v36
  %46 = vmatprep.subr.mxu0 0.0
  %47 = vmatpush1.msra.mxu0 %v35
  %48 = vmatprep.subr.mxu0 0.0
  %49 = vmatpush1.msra.mxu0 %v34
  %50 = vmatprep.subr.mxu0 0.0
  %51 = vmatpush1.msra.mxu0 %v33
  %52 = vmatprep.subr.mxu0 0.0
  %53 = vmatpush1.msra.mxu0 %v32
  %54 = vmatprep.subr.mxu0 0.0
  %55 = vmatpush1.msra.mxu0 %v31
  %56 = vmatprep.subr.mxu0 0.0
  %57 = vmatpush1.msra.mxu0 %v30
  %58 = vmatprep.subr.mxu0 0.0
  %59 = vmatpush1.msra.mxu0 %v29
  %60 = vmatprep.subr.mxu0 0.0
  %61 = vmatpush1.msra.mxu0 %v28
  %62 = vmatprep.subr.mxu0 0.0
  %63 = vmatpush1.msra.mxu0 %v27
  %64 = vmatprep.subr.mxu0 0.0
  %65 = vmatpush1.msra.mxu0 %v26
  %66 = vmatprep.subr.mxu0 0.0
  %67 = vmatpush1.msra.mxu0 %v25
  %68 = vmatprep.subr.mxu0 0.0
  %69 = vmatpush1.msra.mxu0 %v24
  %70 = vmatprep.subr.mxu0 0.0
  %71 = vmatpush1.msra.mxu0 %v23
  %72 = vmatprep.subr.mxu0 0.0
  %73 = vmatpush1.msra.mxu0 %v22
  %74 = vmatprep.subr.mxu0 0.0
  %75 = vmatpush1.msra.mxu0 %v21
  %76 = vmatprep.subr.mxu0 0.0
  %77 = vmatpush2.msra.mxu0 0.0
  %78 = vmatprep.subr.mxu0 0.0
  %79 = vmatpush2.msra.mxu0 0.0
  %80 = vmatprep.subr.mxu0 0.0
  %81 = vmatpush2.msra.mxu0 0.0
  %82 = vmatprep.subr.mxu0 0.0
  %83 = vmatpush2.msra.mxu0 0.0
  %84 = vmatprep.subr.mxu0 0.0
  %85 = vmatpush2.msra.mxu0 0.0
  %86 = vmatprep.subr.mxu0 0.0
  %87 = vmatpush2.msra.mxu0 0.0
  %88 = vmatprep.subr.mxu0 0.0
  %89 = vmatpush2.msra.mxu0 0.0
  %90 = vmatprep.subr.mxu0 0.0
  %91 = vmatpush2.msra.mxu0 0.0
  %92 = vmatprep.subr.mxu0 0.0
  %93 = vmatpush2.msra.mxu0 0.0
  %94 = vmatprep.subr.mxu0 0.0
  %95 = vmatpush2.msra.mxu0 0.0
  %96 = vmatprep.subr.mxu0 0.0
  %97 = vmatpush2.msra.mxu0 0.0
  %98 = vmatprep.subr.mxu0 0.0
  %99 = vmatpush2.msra.mxu0 0.0
  %100 = vmatprep.subr.mxu0 0.0
  %101 = vmatpush2.msra.mxu0 0.0
  %102 = vmatprep.subr.mxu0 0.0
  %103 = vmatpush2.msra.mxu0 0.0
  %104 = vmatprep.subr.mxu0 0.0
  %105 = vmatpush2.msra.mxu0 0.0
  %106 = vmatprep.subr.mxu0 0.0
  %107 = vmatpush2.msra.mxu0 0.0
  %108 = vmatprep.mubr.f32.mxu0 0.0
  %109 = vmatmul.mubr.f32.gmra.mxu0 %v20
  %v110 = vpop.f32.mrf.mxu0
  %v111 = vadd.f32 %v42, %v110
  %v112 = vpop.f32.mrf.mxu0
  %113 = vdwg.mxu0
  %v114 = vmax.f32 %v111, 0.0
  %v115 = vld [vmem:[%s3] sm:$0xff]
  %v116 = vld [vmem:[%s3 + $0x8] sm:$0xff]
  %v117 = vld [vmem:[%s3 + $0x10] sm:$0xff]
  %v118 = vld [vmem:[%s3 + $0x18] sm:$0xff]
  %v119 = vld [vmem:[%s4] sm:$0x1]
  %v121 = vlaneseq
  %v122 = vshrl.u32 %v121, 7
  %v123 = vsub.s32 0, %v122
  %v124 = vrot.slane %v119, %v123
  %vm126 = vcmask 261120
  %v128 = vsel %vm126, %v114, 0
  %130 = vmatprep.subr.mxu0 0.0
  %131 = vmatpush1.msra.mxu0 0.0
  %132 = vmatprep.subr.mxu0 0.0
  %133 = vmatpush1.msra.mxu0 0.0
  %134 = vmatprep.subr.mxu0 0.0
  %135 = vmatpush1.msra.mxu0 0.0
  %136 = vmatprep.subr.mxu0 0.0
  %137 = vmatpush1.msra.mxu0 0.0
  %138 = vmatprep.subr.mxu0 0.0
  %139 = vmatpush1.msra.mxu0 0.0
  %140 = vmatprep.subr.mxu0 0.0
  %141 = vmatpush1.msra.mxu0 0.0
  %142 = vmatprep.subr.mxu0 0.0
  %143 = vmatpush1.msra.mxu0 0.0
  %144 = vmatprep.subr.mxu0 0.0
  %145 = vmatpush1.msra.mxu0 0.0
  %146 = vmatprep.subr.mxu0 0.0
  %147 = vmatpush1.msra.mxu0 0.0
  %148 = vmatprep.subr.mxu0 0.0
  %149 = vmatpush1.msra.mxu0 0.0
  %150 = vmatprep.subr.mxu0 0.0
  %151 = vmatpush1.msra.mxu0 0.0
  %152 = vmatprep.subr.mxu0 0.0
  %153 = vmatpush1.msra.mxu0 0.0
  %154 = vmatprep.subr.mxu0 0.0
  %155 = vmatpush1.msra.mxu0 %v118
  %156 = vmatprep.subr.mxu0 0.0
  %157 = vmatpush1.msra.mxu0 %v117
  %158 = vmatprep.subr.mxu0 0.0
  %159 = vmatpush1.msra.mxu0 %v116
  %160 = vmatprep.subr.mxu0 0.0
  %161 = vmatpush1.msra.mxu0 %v115
  %162 = vmatprep.subr.mxu0 0.0
  %163 = vmatpush2.msra.mxu0 0.0
  %164 = vmatprep.subr.mxu0 0.0
  %165 = vmatpush2.msra.mxu0 0.0
  %166 = vmatprep.subr.mxu0 0.0
  %167 = vmatpush2.msra.mxu0 0.0
  %168 = vmatprep.subr.mxu0 0.0
  %169 = vmatpush2.msra.mxu0 0.0
  %170 = vmatprep.subr.mxu0 0.0
  %171 = vmatpush2.msra.mxu0 0.0
  %172 = vmatprep.subr.mxu0 0.0
  %173 = vmatpush2.msra.mxu0 0.0
  %174 = vmatprep.subr.mxu0 0.0
  %175 = vmatpush2.msra.mxu0 0.0
  %176 = vmatprep.subr.mxu0 0.0
  %177 = vmatpush2.msra.mxu0 0.0
  %178 = vmatprep.subr.mxu0 0.0
  %179 = vmatpush2.msra.mxu0 0.0
  %180 = vmatprep.subr.mxu0 0.0
  %181 = vmatpush2.msra.mxu0 0.0
  %182 = vmatprep.subr.mxu0 0.0
  %183 = vmatpush2.msra.mxu0 0.0
  %184 = vmatprep.subr.mxu0 0.0
  %185 = vmatpush2.msra.mxu0 0.0
  %186 = vmatprep.subr.mxu0 0.0
  %187 = vmatpush2.msra.mxu0 0.0
  %188 = vmatprep.subr.mxu0 0.0
  %189 = vmatpush2.msra.mxu0 0.0
  %190 = vmatprep.subr.mxu0 0.0
  %191 = vmatpush2.msra.mxu0 0.0
  %192 = vmatprep.subr.mxu0 0.0
  %193 = vmatpush2.msra.mxu0 0.0
  %194 = vmatprep.mubr.f32.mxu0 0.0
  %195 = vmatmul.mubr.f32.gmra.mxu0 %v128
  %v196 = vpop.f32.mrf.mxu0
  %v197 = vadd.f32 %v124, %v196
  %v198 = vpop.f32.mrf.mxu0
  %199 = vdwg.mxu0
  %v200 = vxor.u32 %v197, 2147483648
  %v201 = vmul.f32 %v200, 1.442695
  %v202 = vpow.pop %v201
  %v203 = vadd.f32 %v202, 1.0
  %v204 = vrcp.pop %v203
  %v205 = vmul.f32 1.0, %v204
  %206 = vst [vmem:[%s5] sm:$0xf] %v205
  // Predicated region
  $region22: #{se_scale.1} parent=0 // pred_check
    _
  $region23: #{se_scale.1} parent=0 // pred_check_branch
    %208 = sbr.rel (0) target = $region25
  $region24: #{se_scale.1} parent=0 // pred_region
    _
  $region25: #{se_scale.1} parent=0 // pred_fallthru
    _
  // Predicated region
  $region26: #{se_scale.1} parent=0 // pred_check
    _
  $region27: #{se_scale.1} parent=0 // pred_check_branch
    %210 = sbr.rel (0) target = $region29
  $region28: #{se_scale.1} parent=0 // pred_region
    _
  $region29: #{se_scale.1} parent=0 // pred_fallthru
    _

</llo_original>
